<compile_context>
chip_gen: v7x
topology: tpu7x:2x2x1
jax: 0.10.0
libtpu: 0.0.40
codegen_flags: <defaults>
</compile_context>

<pallas_src>
import functools

import jax
import jax.numpy as jnp
from jax import lax
from jax.experimental import pallas as pl
from jax.experimental.pallas import tpu as pltpu


def _round_up(n, m):
    return ((n + m - 1) // m) * m


def _pad2(a, rows, cols):
    return jnp.pad(a, ((0, rows - a.shape[0]), (0, cols - a.shape[1])))


def actor_critic_kernel(x_ref, w1_ref, b1_ref, mask_ref, wh_ref, bh_ref,
                        out_ref, *, n_actions):
    # fc1 + ReLU  (K = n_inputs padded to 128, N = hidden padded to 128)
    h = jnp.dot(x_ref[...], w1_ref[...],
                preferred_element_type=jnp.float32) + b1_ref[...]
    h = jnp.maximum(h, 0.0)

    # Dropout(p=0.5), training mode: single multiply by precomputed {0, 2} scale mask.
    h = h * mask_ref[...]

    # Fused heads: one (B,128) x (128,128) matmul covers critic + mu + sigma (+ padding).
    y = jnp.dot(h, wh_ref[...], preferred_element_type=jnp.float32) + bh_ref[...]

    # Per-column nonlinearities via whole-tile selects (lane-dense, no tiny slices).
    col = lax.broadcasted_iota(jnp.int32, y.shape, 1)
    mu_cols = (col >= 1) & (col <= n_actions)
    sig_cols = (col > n_actions) & (col <= 2 * n_actions)

    mu_y = 24.0 * jnp.tanh(y)
    # numerically stable softplus: max(y,0) + log1p(exp(-|y|))
    sig_y = jnp.maximum(y, 0.0) + jnp.log1p(jnp.exp(-jnp.abs(y))) + 1e-5

    out = jnp.where(mu_cols, mu_y, y)          # col 0 (value) and padding stay raw
    out_ref[...] = jnp.where(sig_cols, sig_y, out)


@jax.jit
def actor_critic_forward(x, w1, b1, wc, bc, wmu, bmu, ws, bs, dropout_key):
    B, n_in = x.shape
    hidden = w1.shape[1]
    A = wmu.shape[1]

    B_pad = _round_up(B, 8)
    IN_PAD = _round_up(n_in, 128)
    H_PAD = _round_up(hidden, 128)
    OUT_PAD = _round_up(1 + 2 * A, 128)

    # Zero-padded, lane-aligned operands (zero rows/cols cannot leak into outputs).
    x_p = _pad2(x.astype(jnp.float32), B_pad, IN_PAD)
    w1_p = _pad2(w1, IN_PAD, H_PAD)
    b1_p = _pad2(jnp.reshape(b1, (1, -1)), 1, H_PAD)

    # Fuse the three heads into one weight / one bias row.
    wh = jnp.concatenate([wc, wmu, ws], axis=1)                       # (hidden, 1+2A)
    bh = jnp.concatenate([jnp.reshape(bc, (1, -1)),
                          jnp.reshape(bmu, (1, -1)),
                          jnp.reshape(bs, (1, -1))], axis=1)          # (1, 1+2A)
    wh_p = _pad2(wh, H_PAD, OUT_PAD)
    bh_p = _pad2(bh, 1, OUT_PAD)

    # Inverted dropout mask, precomputed as a {0, 2} float scale (p = 0.5).
    mask = jax.random.bernoulli(dropout_key, 0.5, (B_pad, H_PAD)).astype(jnp.float32) * 2.0

    kernel = functools.partial(actor_critic_kernel, n_actions=A)

    out = pl.pallas_call(
        kernel,
        out_shape=jax.ShapeDtypeStruct((B_pad, OUT_PAD), jnp.float32),
        in_specs=[pl.BlockSpec(memory_space=pltpu.MemorySpace.VMEM)] * 6,
        out_specs=pl.BlockSpec(memory_space=pltpu.MemorySpace.VMEM),
        cost_estimate=pl.CostEstimate(
            flops=2 * B_pad * (IN_PAD * H_PAD + H_PAD * OUT_PAD),
            transcendentals=2 * B_pad * OUT_PAD,
            bytes_accessed=4 * (x_p.size + w1_p.size + b1_p.size + mask.size
                                + wh_p.size + bh_p.size + B_pad * OUT_PAD),
        ),
    )(x_p, w1_p, b1_p, mask, wh_p, bh_p)

    value = out[:B, 0:1]
    mu = out[:B, 1:1 + A]
    sigma = out[:B, 1 + A:1 + 2 * A]
    return value, mu, sigma


def xavier_normal(key, fan_in, fan_out):
    std = (2.0 / (fan_in + fan_out)) ** 0.5
    # stored as (in, out), i.e. the transpose of PyTorch's (out, in) weight
    return std * jax.random.normal(key, (fan_in, fan_out), dtype=jnp.float32)


if __name__ == "__main__":
    # Module-consistent small shapes: batch=8, n_inputs=16, hidden=100, actions=4
    B, n_inputs, hidden, n_actions = 8, 16, 100, 4

    root = jax.random.PRNGKey(0)
    kx, k1, k2, k3, k4, kdrop = jax.random.split(root, 6)

    x = jax.random.normal(kx, (B, n_inputs), dtype=jnp.float32)

    # Parameters (xavier_normal weights, zero biases — as in init_weights)
    w1 = xavier_normal(k1, n_inputs, hidden)
    b1 = jnp.zeros((1, hidden), dtype=jnp.float32)
    wc = xavier_normal(k2, hidden, 1)
    bc = jnp.zeros((1, 1), dtype=jnp.float32)
    wmu = xavier_normal(k3, hidden, n_actions)
    bmu = jnp.zeros((1, n_actions), dtype=jnp.float32)
    ws = xavier_normal(k4, hidden, n_actions)
    bs = jnp.zeros((1, n_actions), dtype=jnp.float32)

    value, mu, sigma = actor_critic_forward(x, w1, b1, wc, bc, wmu, bmu, ws, bs, kdrop)
    jax.block_until_ready((value, mu, sigma))

    assert value.shape == (B, 1)
    assert mu.shape == (B, n_actions)
    assert sigma.shape == (B, n_actions)
    assert bool(jnp.all(sigma > 0.0))
    assert bool(jnp.all(jnp.abs(mu) <= 24.0))

    print("KERNEL_OK")
</pallas_src>

<mosaic_0001>
module attributes {stable_mosaic.version = 11 : i64} {
  func.func @actor_critic_kernel(%arg0: memref<8x128xf32, #tpu.memory_space<vmem>>, %arg1: memref<128x128xf32, #tpu.memory_space<vmem>>, %arg2: memref<1x128xf32, #tpu.memory_space<vmem>>, %arg3: memref<8x128xf32, #tpu.memory_space<vmem>>, %arg4: memref<128x128xf32, #tpu.memory_space<vmem>>, %arg5: memref<1x128xf32, #tpu.memory_space<vmem>>, %arg6: memref<8x128xf32, #tpu.memory_space<vmem>>) attributes {dimension_semantics = [], scalar_prefetch = 0 : i64, scratch_operands = 0 : i64, tpu.core_type = #tpu.core_type<tc>} {
    %c0 = arith.constant 0 : index
    %c0_0 = arith.constant 0 : index
    %0 = vector.load %arg0[%c0, %c0_0] : memref<8x128xf32, #tpu.memory_space<vmem>>, vector<8x128xf32>
    %c0_1 = arith.constant 0 : index
    %c0_2 = arith.constant 0 : index
    %1 = vector.load %arg1[%c0_1, %c0_2] : memref<128x128xf32, #tpu.memory_space<vmem>>, vector<128x128xf32>
    %cst = arith.constant dense<0.000000e+00> : vector<8x128xf32>
    %2 = tpu.matmul %0, %1, %cst {dimension_numbers = #tpu.dot_dimension_numbers<[1], [0], [0], [1], [0, 0, 1, 1], [], []>} : vector<8x128xf32>, vector<128x128xf32>, vector<8x128xf32> -> vector<8x128xf32>
    %c0_3 = arith.constant 0 : index
    %c0_4 = arith.constant 0 : index
    %3 = vector.load %arg2[%c0_3, %c0_4] : memref<1x128xf32, #tpu.memory_space<vmem>>, vector<1x128xf32>
    %4 = vector.broadcast %3 : vector<1x128xf32> to vector<8x128xf32>
    %5 = arith.addf %2, %4 : vector<8x128xf32>
    %cst_5 = arith.constant 0.000000e+00 : f32
    %6 = vector.broadcast %cst_5 : f32 to vector<8x128xf32>
    %7 = arith.maximumf %5, %6 : vector<8x128xf32>
    %c0_6 = arith.constant 0 : index
    %c0_7 = arith.constant 0 : index
    %8 = vector.load %arg3[%c0_6, %c0_7] : memref<8x128xf32, #tpu.memory_space<vmem>>, vector<8x128xf32>
    %9 = arith.mulf %7, %8 : vector<8x128xf32>
    %c0_8 = arith.constant 0 : index
    %c0_9 = arith.constant 0 : index
    %10 = vector.load %arg4[%c0_8, %c0_9] : memref<128x128xf32, #tpu.memory_space<vmem>>, vector<128x128xf32>
    %cst_10 = arith.constant dense<0.000000e+00> : vector<8x128xf32>
    %11 = tpu.matmul %9, %10, %cst_10 {dimension_numbers = #tpu.dot_dimension_numbers<[1], [0], [0], [1], [0, 0, 1, 1], [], []>} : vector<8x128xf32>, vector<128x128xf32>, vector<8x128xf32> -> vector<8x128xf32>
    %c0_11 = arith.constant 0 : index
    %c0_12 = arith.constant 0 : index
    %12 = vector.load %arg5[%c0_11, %c0_12] : memref<1x128xf32, #tpu.memory_space<vmem>>, vector<1x128xf32>
    %13 = vector.broadcast %12 : vector<1x128xf32> to vector<8x128xf32>
    %14 = arith.addf %11, %13 : vector<8x128xf32>
    %15 = tpu.iota {dimensions = array<i32: 1>} : vector<8x128xi32>
    %c1_i32 = arith.constant 1 : i32
    %16 = vector.broadcast %c1_i32 : i32 to vector<8x128xi32>
    %17 = arith.cmpi sge, %15, %16 : vector<8x128xi32>
    %c4_i32 = arith.constant 4 : i32
    %18 = vector.broadcast %c4_i32 : i32 to vector<8x128xi32>
    %19 = arith.cmpi sle, %15, %18 : vector<8x128xi32>
    %20 = arith.andi %17, %19 : vector<8x128xi1>
    %c4_i32_13 = arith.constant 4 : i32
    %21 = vector.broadcast %c4_i32_13 : i32 to vector<8x128xi32>
    %22 = arith.cmpi sgt, %15, %21 : vector<8x128xi32>
    %c8_i32 = arith.constant 8 : i32
    %23 = vector.broadcast %c8_i32 : i32 to vector<8x128xi32>
    %24 = arith.cmpi sle, %15, %23 : vector<8x128xi32>
    %25 = arith.andi %22, %24 : vector<8x128xi1>
    %26 = math.tanh %14 : vector<8x128xf32>
    %cst_14 = arith.constant 2.400000e+01 : f32
    %27 = vector.broadcast %cst_14 : f32 to vector<8x128xf32>
    %28 = arith.mulf %27, %26 : vector<8x128xf32>
    %cst_15 = arith.constant 0.000000e+00 : f32
    %29 = vector.broadcast %cst_15 : f32 to vector<8x128xf32>
    %30 = arith.maximumf %14, %29 : vector<8x128xf32>
    %31 = math.absf %14 : vector<8x128xf32>
    %cst_16 = arith.constant 0.000000e+00 : f32
    %32 = vector.broadcast %cst_16 : f32 to vector<8x128xf32>
    %33 = arith.subf %32, %31 : vector<8x128xf32>
    %34 = math.exp %33 : vector<8x128xf32>
    %35 = math.log1p %34 : vector<8x128xf32>
    %36 = arith.addf %30, %35 : vector<8x128xf32>
    %cst_17 = arith.constant 9.99999974E-6 : f32
    %37 = vector.broadcast %cst_17 : f32 to vector<8x128xf32>
    %38 = arith.addf %36, %37 : vector<8x128xf32>
    %39 = arith.select %20, %28, %14 : vector<8x128xi1>, vector<8x128xf32>
    %40 = arith.select %25, %38, %39 : vector<8x128xi1>, vector<8x128xf32>
    %c0_18 = arith.constant 0 : index
    %c0_19 = arith.constant 0 : index
    %41 = vector.load %arg6[%c0_18, %c0_19] : memref<8x128xf32, #tpu.memory_space<vmem>>, vector<8x128xf32>
    tpu.vector_store %arg6[%c0_18, %c0_19], %40 {strides = array<i32>} : memref<8x128xf32, #tpu.memory_space<vmem>>, vector<8x128xf32>,
    return
  }
}

</mosaic_0001>

<llo_original>
// kernel: actor_critic_forward.1
$region0: #{actor_critic_forward.1}
  #allocation0 [shape = 'u32[]', space=smem, size = 0x4, offset = 0x4, fixed_abs, tag = 'smem constant byte address 0x4 - core index']
  #allocation1 [shape = 'u32[144,128]{1,0:T(1,128)}', space=vmem, size = 0x12000, scoped, tag = 'internal scratch']
  %s0 = inlined_call_operand.vmem [shape: f32[8,128], index: 0, kind: input, shape index: {}]
  %s1 = inlined_call_operand.vmem [shape: f32[128,128], index: 1, kind: input, shape index: {}]
  %s2 = inlined_call_operand.vmem [shape: f32[1,128], index: 2, kind: input, shape index: {}]
  %s3 = inlined_call_operand.vmem [shape: f32[8,128], index: 3, kind: input, shape index: {}]
  %s4 = inlined_call_operand.vmem [shape: f32[128,128], index: 4, kind: input, shape index: {}]
  %s5 = inlined_call_operand.vmem [shape: f32[1,128], index: 5, kind: input, shape index: {}]
  %s6 = inlined_call_operand.vmem [shape: f32[8,128], index: 6, kind: output, shape index: {}]
  %s7 = sld [smem:[#allocation0]]
  $region34: #{actor_critic_forward.1} parent=0
    _
  %s9 = ssub.s32 1, %s7
  %s10 = scalar_select 0, %s9, %s7
  // Predicated region
  $region2: #{actor_critic_forward.1} parent=0 // pred_check
    _
  $region3: #{actor_critic_forward.1} parent=0 // pred_check_branch
    %12 = sbr.rel (0) target = $region5
  $region4: #{actor_critic_forward.1} parent=0 // pred_region
    _
  $region5: #{actor_critic_forward.1} parent=0 // pred_fallthru
    _
  // Predicated region
  $region6: #{actor_critic_forward.1} parent=0 // pred_check
    _
  $region7: #{actor_critic_forward.1} parent=0 // pred_check_branch
    %14 = sbr.rel (0) target = $region9
  $region8: #{actor_critic_forward.1} parent=0 // pred_region
    _
  $region9: #{actor_critic_forward.1} parent=0 // pred_fallthru
    _
  // Predicated region
  $region10: #{actor_critic_forward.1} parent=0 // pred_check
    _
  $region11: #{actor_critic_forward.1} parent=0 // pred_check_branch
    %16 = sbr.rel (0) target = $region13
  $region12: #{actor_critic_forward.1} parent=0 // pred_region
    _
  $region13: #{actor_critic_forward.1} parent=0 // pred_fallthru
    _
  // Predicated region
  $region14: #{actor_critic_forward.1} parent=0 // pred_check
    _
  $region15: #{actor_critic_forward.1} parent=0 // pred_check_branch
    %18 = sbr.rel (0) target = $region17
  $region16: #{actor_critic_forward.1} parent=0 // pred_region
    _
  $region17: #{actor_critic_forward.1} parent=0 // pred_fallthru
    _
  // Predicated region
  $region18: #{actor_critic_forward.1} parent=0 // pred_check
    _
  $region19: #{actor_critic_forward.1} parent=0 // pred_check_branch
    %20 = sbr.rel (0) target = $region21
  $region20: #{actor_critic_forward.1} parent=0 // pred_region
    _
  $region21: #{actor_critic_forward.1} parent=0 // pred_fallthru
    _
  // Predicated region
  $region22: #{actor_critic_forward.1} parent=0 // pred_check
    _
  $region23: #{actor_critic_forward.1} parent=0 // pred_check_branch
    %22 = sbr.rel (0) target = $region25
  $region24: #{actor_critic_forward.1} parent=0 // pred_region
    _
  $region25: #{actor_critic_forward.1} parent=0 // pred_fallthru
    _
  %v23 = vld [vmem:[%s0] sm:$0xff]
  %v24 = vld [vmem:[%s1] sm:$0xff]
  %v25 = vld [vmem:[%s1 + $0x8] sm:$0xff]
  %v26 = vld [vmem:[%s1 + $0x10] sm:$0xff]
  %v27 = vld [vmem:[%s1 + $0x18] sm:$0xff]
  %v28 = vld [vmem:[%s1 + $0x20] sm:$0xff]
  %v29 = vld [vmem:[%s1 + $0x28] sm:$0xff]
  %v30 = vld [vmem:[%s1 + $0x30] sm:$0xff]
  %v31 = vld [vmem:[%s1 + $0x38] sm:$0xff]
  %v32 = vld [vmem:[%s1 + $0x40] sm:$0xff]
  %v33 = vld [vmem:[%s1 + $0x48] sm:$0xff]
  %v34 = vld [vmem:[%s1 + $0x50] sm:$0xff]
  %v35 = vld [vmem:[%s1 + $0x58] sm:$0xff]
  %v36 = vld [vmem:[%s1 + $0x60] sm:$0xff]
  %v37 = vld [vmem:[%s1 + $0x68] sm:$0xff]
  %v38 = vld [vmem:[%s1 + $0x70] sm:$0xff]
  %v39 = vld [vmem:[%s1 + $0x78] sm:$0xff]
  %v40 = vld [vmem:[%s2] sm:$0x1]
  %v42 = vlaneseq
  %v43 = vshrl.u32 %v42, 7
  %v44 = vsub.s32 0, %v43
  %v45 = vrot.slane %v40, %v44
  %47 = vmatprep.subr.mxu0 0.0
  %48 = vmatpush1.msra.mxu0 %v24
  %49 = vmatprep.subr.mxu0 0.0
  %50 = vmatpush1.msra.mxu0 %v25
  %51 = vmatprep.subr.mxu0 0.0
  %52 = vmatpush1.msra.mxu0 %v26
  %53 = vmatprep.subr.mxu0 0.0
  %54 = vmatpush1.msra.mxu0 %v27
  %55 = vmatprep.subr.mxu0 0.0
  %56 = vmatpush1.msra.mxu0 %v28
  %57 = vmatprep.subr.mxu0 0.0
  %58 = vmatpush1.msra.mxu0 %v29
  %59 = vmatprep.subr.mxu0 0.0
  %60 = vmatpush1.msra.mxu0 %v30
  %61 = vmatprep.subr.mxu0 0.0
  %62 = vmatpush1.msra.mxu0 %v31
  %63 = vmatprep.subr.mxu0 0.0
  %64 = vmatpush1.msra.mxu0 %v32
  %65 = vmatprep.subr.mxu0 0.0
  %66 = vmatpush1.msra.mxu0 %v33
  %67 = vmatprep.subr.mxu0 0.0
  %68 = vmatpush1.msra.mxu0 %v34
  %69 = vmatprep.subr.mxu0 0.0
  %70 = vmatpush1.msra.mxu0 %v35
  %71 = vmatprep.subr.mxu0 0.0
  %72 = vmatpush1.msra.mxu0 %v36
  %73 = vmatprep.subr.mxu0 0.0
  %74 = vmatpush1.msra.mxu0 %v37
  %75 = vmatprep.subr.mxu0 0.0
  %76 = vmatpush1.msra.mxu0 %v38
  %77 = vmatprep.subr.mxu0 0.0
  %78 = vmatpush1.msra.mxu0 %v39
  %79 = vmatprep.subr.mxu0 0.0
  %80 = vmatpush1.msra.mxu0 0.0
  %81 = vmatprep.subr.mxu0 0.0
  %82 = vmatpush1.msra.mxu0 0.0
  %83 = vmatprep.subr.mxu0 0.0
  %84 = vmatpush1.msra.mxu0 0.0
  %85 = vmatprep.subr.mxu0 0.0
  %86 = vmatpush1.msra.mxu0 0.0
  %87 = vmatprep.subr.mxu0 0.0
  %88 = vmatpush1.msra.mxu0 0.0
  %89 = vmatprep.subr.mxu0 0.0
  %90 = vmatpush1.msra.mxu0 0.0
  %91 = vmatprep.subr.mxu0 0.0
  %92 = vmatpush1.msra.mxu0 0.0
  %93 = vmatprep.subr.mxu0 0.0
  %94 = vmatpush1.msra.mxu0 0.0
  %95 = vmatprep.subr.mxu0 0.0
  %96 = vmatpush1.msra.mxu0 0.0
  %97 = vmatprep.subr.mxu0 0.0
  %98 = vmatpush1.msra.mxu0 0.0
  %99 = vmatprep.subr.mxu0 0.0
  %100 = vmatpush1.msra.mxu0 0.0
  %101 = vmatprep.subr.mxu0 0.0
  %102 = vmatpush1.msra.mxu0 0.0
  %103 = vmatprep.subr.mxu0 0.0
  %104 = vmatpush1.msra.mxu0 0.0
  %105 = vmatprep.subr.mxu0 0.0
  %106 = vmatpush1.msra.mxu0 0.0
  %107 = vmatprep.subr.mxu0 0.0
  %108 = vmatpush1.msra.mxu0 0.0
  %109 = vmatprep.subr.mxu0 0.0
  %110 = vmatpush1.msra.mxu0 0.0
  %111 = vmatprep.mubr.f32.mxu0 0.0
  %112 = vmatmul.mubr.f32.gmra.mrb[0].mxu0 %v23
  %v113 = vpop.f32.mrb[0].mxu0
  %v114 = vadd.f32 %v45, %v113
  %v115 = vpop.f32.mrb[0].mxu0
  %116 = vdwg.mxu0
  %v117 = vmax.f32 %v114, 0.0
  %v118 = vld [vmem:[%s3] sm:$0xff]
  %v119 = vmul.f32 %v117, %v118
  %v120 = vld [vmem:[%s4] sm:$0xff]
  %v121 = vld [vmem:[%s4 + $0x8] sm:$0xff]
  %v122 = vld [vmem:[%s4 + $0x10] sm:$0xff]
  %v123 = vld [vmem:[%s4 + $0x18] sm:$0xff]
  %v124 = vld [vmem:[%s4 + $0x20] sm:$0xff]
  %v125 = vld [vmem:[%s4 + $0x28] sm:$0xff]
  %v126 = vld [vmem:[%s4 + $0x30] sm:$0xff]
  %v127 = vld [vmem:[%s4 + $0x38] sm:$0xff]
  %v128 = vld [vmem:[%s4 + $0x40] sm:$0xff]
  %v129 = vld [vmem:[%s4 + $0x48] sm:$0xff]
  %v130 = vld [vmem:[%s4 + $0x50] sm:$0xff]
  %v131 = vld [vmem:[%s4 + $0x58] sm:$0xff]
  %v132 = vld [vmem:[%s4 + $0x60] sm:$0xff]
  %v133 = vld [vmem:[%s4 + $0x68] sm:$0xff]
  %v134 = vld [vmem:[%s4 + $0x70] sm:$0xff]
  %v135 = vld [vmem:[%s4 + $0x78] sm:$0xff]
  %v136 = vld [vmem:[%s5] sm:$0x1]
  %v138 = vlaneseq
  %v139 = vshrl.u32 %v138, 7
  %v140 = vsub.s32 0, %v139
  %v141 = vrot.slane %v136, %v140
  %143 = vmatprep.subr.mxu0 0.0
  %144 = vmatpush1.msra.mxu0 %v120
  %145 = vmatprep.subr.mxu0 0.0
  %146 = vmatpush1.msra.mxu0 %v121
  %147 = vmatprep.subr.mxu0 0.0
  %148 = vmatpush1.msra.mxu0 %v122
  %149 = vmatprep.subr.mxu0 0.0
  %150 = vmatpush1.msra.mxu0 %v123
  %151 = vmatprep.subr.mxu0 0.0
  %152 = vmatpush1.msra.mxu0 %v124
  %153 = vmatprep.subr.mxu0 0.0
  %154 = vmatpush1.msra.mxu0 %v125
  %155 = vmatprep.subr.mxu0 0.0
  %156 = vmatpush1.msra.mxu0 %v126
  %157 = vmatprep.subr.mxu0 0.0
  %158 = vmatpush1.msra.mxu0 %v127
  %159 = vmatprep.subr.mxu0 0.0
  %160 = vmatpush1.msra.mxu0 %v128
  %161 = vmatprep.subr.mxu0 0.0
  %162 = vmatpush1.msra.mxu0 %v129
  %163 = vmatprep.subr.mxu0 0.0
  %164 = vmatpush1.msra.mxu0 %v130
  %165 = vmatprep.subr.mxu0 0.0
  %166 = vmatpush1.msra.mxu0 %v131
  %167 = vmatprep.subr.mxu0 0.0
  %168 = vmatpush1.msra.mxu0 %v132
  %169 = vmatprep.subr.mxu0 0.0
  %170 = vmatpush1.msra.mxu0 %v133
  %171 = vmatprep.subr.mxu0 0.0
  %172 = vmatpush1.msra.mxu0 %v134
  %173 = vmatprep.subr.mxu0 0.0
  %174 = vmatpush1.msra.mxu0 %v135
  %175 = vmatprep.subr.mxu0 0.0
  %176 = vmatpush1.msra.mxu0 0.0
  %177 = vmatprep.subr.mxu0 0.0
  %178 = vmatpush1.msra.mxu0 0.0
  %179 = vmatprep.subr.mxu0 0.0
  %180 = vmatpush1.msra.mxu0 0.0
  %181 = vmatprep.subr.mxu0 0.0
  %182 = vmatpush1.msra.mxu0 0.0
  %183 = vmatprep.subr.mxu0 0.0
  %184 = vmatpush1.msra.mxu0 0.0
  %185 = vmatprep.subr.mxu0 0.0
  %186 = vmatpush1.msra.mxu0 0.0
  %187 = vmatprep.subr.mxu0 0.0
  %188 = vmatpush1.msra.mxu0 0.0
  %189 = vmatprep.subr.mxu0 0.0
  %190 = vmatpush1.msra.mxu0 0.0
  %191 = vmatprep.subr.mxu0 0.0
  %192 = vmatpush1.msra.mxu0 0.0
  %193 = vmatprep.subr.mxu0 0.0
  %194 = vmatpush1.msra.mxu0 0.0
  %195 = vmatprep.subr.mxu0 0.0
  %196 = vmatpush1.msra.mxu0 0.0
  %197 = vmatprep.subr.mxu0 0.0
  %198 = vmatpush1.msra.mxu0 0.0
  %199 = vmatprep.subr.mxu0 0.0
  %200 = vmatpush1.msra.mxu0 0.0
  %201 = vmatprep.subr.mxu0 0.0
  %202 = vmatpush1.msra.mxu0 0.0
  %203 = vmatprep.subr.mxu0 0.0
  %204 = vmatpush1.msra.mxu0 0.0
  %205 = vmatprep.subr.mxu0 0.0
  %206 = vmatpush1.msra.mxu0 0.0
  %207 = vmatprep.mubr.f32.mxu0 0.0
  %208 = vmatmul.mubr.f32.gmra.mrb[0].mxu0 %v119
  %v209 = vpop.f32.mrb[0].mxu0
  %v210 = vadd.f32 %v141, %v209
  %v211 = vpop.f32.mrb[0].mxu0
  %212 = vdwg.mxu0
  %v213 = vlaneseq
  %v214 = vand.u32 %v213, 127
  %vm215 = vcmp.ge.s32.totalorder %v214, 1
  %vm216 = vcmp.le.s32.totalorder %v214, 4
  %vm217 = vmand %vm215, %vm216
  %vm218 = vcmp.gt.s32.totalorder %v214, 4
  %vm219 = vcmp.le.s32.totalorder %v214, 8
  %vm220 = vmand %vm218, %vm219
  %v221 = vtanh.pop %v210
  %v222 = vmul.f32 %v221, 24.0
  %v223 = vmax.f32 %v210, 0.0
  %v224 = vand.u32 2147483647, %v210
  %v225 = vsub.f32 0.0, %v224
  %v226 = vmul.f32 %v225, 1.442695
  %v227 = vpow.pop %v226
  %v228 = vadd.f32 %v227, 1.0
  %v229 = vlog2.pop %v228
  %v230 = vmul.f32 %v229, 0.6931472
  %v231 = vmul.f32 -0.5, %v227
  %v232 = vadd.f32 %v231, 1.0
  %v233 = vmul.f32 %v232, %v227
  %v234 = vand.u32 2147483647, %v227
  %vm235 = vcmp.lt.f32.partialorder %v234, 0.0004427343
  %v236 = vsel %vm235, %v233, %v230
  %v237 = vadd.f32 %v223, %v236
  %v238 = vadd.f32 %v237, 1e-05
  %v239 = vsel %vm217, %v222, %v210
  %v240 = vsel %vm220, %v238, %v239
  %241 = vst [vmem:[%s6] sm:$0xff] %v240
  // Predicated region
  $region26: #{actor_critic_forward.1} parent=0 // pred_check
    _
  $region27: #{actor_critic_forward.1} parent=0 // pred_check_branch
    %243 = sbr.rel (0) target = $region29
  $region28: #{actor_critic_forward.1} parent=0 // pred_region
    _
  $region29: #{actor_critic_forward.1} parent=0 // pred_fallthru
    _
  // Predicated region
  $region30: #{actor_critic_forward.1} parent=0 // pred_check
    _
  $region31: #{actor_critic_forward.1} parent=0 // pred_check_branch
    %245 = sbr.rel (0) target = $region33
  $region32: #{actor_critic_forward.1} parent=0 // pred_region
    _
  $region33: #{actor_critic_forward.1} parent=0 // pred_fallthru
    _

</llo_original>
